<compile_context>
chip_gen: v5e
topology: v5e:2x2
jax: 0.10.0
libtpu: 0.0.40
codegen_flags: <defaults>
</compile_context>

<pallas_src>
import jax
import jax.numpy as jnp
from jax import lax
from jax.experimental import pallas as pl
from jax.experimental.pallas import tpu as pltpu


def _round_up(v, m):
    return (v + m - 1) // m * m


# ----------------------------------------------------------------------------
# Fused kernel: streamed GCN aggregation + fc1 + L2-normalize + {sigmoid, softplus}
# ----------------------------------------------------------------------------
def fused_gnn_kernel(a_ref, xw1_ref, b1_ref, wfc1_ref, bfc1_ref,
                     wfc23_ref, b23_ref, fea_ref, mt_ref, acc_ref):
    k = pl.program_id(1)
    tb = fea_ref.shape[0]                     # batch tile (multiple of 8)
    group = acc_ref.shape[0] // tb            # nodes per sample (= 10)

    @pl.when(k == 0)
    def _init():
        acc_ref[...] = jnp.zeros_like(acc_ref)

    # One big aggregation dot per grid step: [group*TB, NK] @ [NK, 32] (bf16 in,
    # f32 accumulate).  Row g*TB + b of the accumulator is node (b_glob*10 + g).
    acc_ref[...] += jnp.dot(a_ref[...], xw1_ref[...],
                            preferred_element_type=jnp.float32)

    @pl.when(k == pl.num_programs(1) - 1)
    def _epilogue():
        # GCN bias + relu per group, lane-concat into the [TB, 320] fc1 input
        # slab (this IS the reference's x.view(N/10, 320), reshape-free).
        b1 = jnp.broadcast_to(b1_ref[...], (tb, b1_ref.shape[1]))
        hs = [jnp.maximum(acc_ref[g * tb:(g + 1) * tb, :] + b1, 0.0)
              for g in range(group)]
        h = jnp.concatenate(hs, axis=1)                         # [TB, 320]

        f = jnp.dot(h, wfc1_ref[...], preferred_element_type=jnp.float32)
        f = f + jnp.broadcast_to(bfc1_ref[...], f.shape)        # [TB, 256]

        # F.normalize(p=2, dim=1, eps=1e-12) via rsqrt on the EUP.
        ssq = jnp.sum(f * f, axis=1, keepdims=True)
        fn = f * lax.rsqrt(jnp.maximum(ssq, 1e-24))             # eps^2 clamp
        fea_ref[...] = fn

        # fc2 / fc3 fused into a single [256, 2] dot; biases read from SMEM.
        mt = jnp.dot(fn, wfc23_ref[...], preferred_element_type=jnp.float32)
        mu_lin = mt[:, 0:1] + b23_ref[0]
        th_lin = mt[:, 1:2] + b23_ref[1]
        mu = jax.nn.sigmoid(mu_lin)
        # numerically stable softplus: max(x,0) + log1p(exp(-|x|))
        th = jnp.maximum(th_lin, 0.0) + jnp.log1p(jnp.exp(-jnp.abs(th_lin)))
        mt_ref[...] = jnp.concatenate([mu, th], axis=1)         # one packed store


def fused_gnn(a_flat, xw1, b1, wfc1, bfc1, wfc23, b23, *, group, tb, nk):
    gb_rows, n_pad = a_flat.shape             # gb_rows = B_tiles * group * tb
    b_tiles = gb_rows // (group * tb)
    k_tiles = n_pad // nk
    b_pad = b_tiles * tb
    hdim = xw1.shape[1]                       # 32
    fdim = wfc1.shape[1]                      # 256

    flops = (2 * gb_rows * n_pad * hdim              # aggregation
             + 2 * b_pad * wfc1.shape[0] * fdim      # fc1
             + 2 * b_pad * fdim * 2)                 # fc2/fc3
    bytes_accessed = (a_flat.size * a_flat.dtype.itemsize
                      + xw1.size * xw1.dtype.itemsize
                      + (b1.size + wfc1.size + bfc1.size + wfc23.size + b23.size) * 4
                      + b_pad * (fdim + 2) * 4)

    return pl.pallas_call(
        fused_gnn_kernel,
        out_shape=(
            jax.ShapeDtypeStruct((b_pad, fdim), jnp.float32),   # fea_mu (padded)
            jax.ShapeDtypeStruct((b_pad, 2), jnp.float32),      # [mu, theta]
        ),
        grid=(b_tiles, k_tiles),
        in_specs=[
            pl.BlockSpec((group * tb, nk), lambda i, k: (i, k)),   # adjacency tile
            pl.BlockSpec((nk, hdim), lambda i, k: (k, 0)),         # xw1 tile
            pl.BlockSpec(b1.shape, lambda i, k: (0, 0)),           # conv bias
            pl.BlockSpec(wfc1.shape, lambda i, k: (0, 0)),         # fc1 weight
            pl.BlockSpec(bfc1.shape, lambda i, k: (0, 0)),         # fc1 bias
            pl.BlockSpec(wfc23.shape, lambda i, k: (0, 0)),        # fc2|fc3 weight
            pl.BlockSpec(memory_space=pltpu.MemorySpace.SMEM),     # fc2|fc3 bias
        ],
        out_specs=(
            pl.BlockSpec((tb, fdim), lambda i, k: (i, 0)),
            pl.BlockSpec((tb, 2), lambda i, k: (i, 0)),
        ),
        scratch_shapes=[pltpu.VMEM((group * tb, hdim), jnp.float32)],
        compiler_params=pltpu.CompilerParams(
            dimension_semantics=("parallel", "arbitrary")),
        cost_estimate=pl.CostEstimate(flops=flops,
                                      transcendentals=8 * b_pad,
                                      bytes_accessed=bytes_accessed),
    )(a_flat, xw1, b1, wfc1, bfc1, wfc23, b23)


# ----------------------------------------------------------------------------
# Plain-JAX glue: dense normalized adjacency from edge_index (PyG GCNConv norm)
# ----------------------------------------------------------------------------
def build_norm_adj(edge_index, num_nodes):
    src, dst = edge_index[0], edge_index[1]
    a = jnp.zeros((num_nodes, num_nodes), jnp.float32).at[dst, src].add(1.0)
    a = a + jnp.eye(num_nodes, dtype=jnp.float32)          # add self loops
    deg = a.sum(axis=1)                                     # in-degree incl. self
    dinv = jnp.where(deg > 0.0, 1.0 / jnp.sqrt(deg), 0.0)
    return dinv[:, None] * a * dinv[None, :]


def gnn_forward(x, edge_index, params):
    n = x.shape[0]
    hdim = params["w_conv1"].shape[1]              # 32
    fc1_in = params["w_fc1"].shape[0]              # 320
    group = fc1_in // hdim                         # 10 nodes per sample
    bsz = n // group                               # graph samples

    # Tile sizes (fit comfortably in every generation's default scoped VMEM:
    # bf16 adjacency block <= 10*64*512*2B = 640 KiB, x2 pipeline buffers).
    tb = min(64, _round_up(bsz, 8))
    b_pad = _round_up(bsz, tb)
    nk = min(512, _round_up(n, 128))
    n_pad = _round_up(n, nk)

    # Pre-apply the GCN weight (trivial [N,2]@[2,32]) and cast to bf16.
    xw1 = (x @ params["w_conv1"]).astype(jnp.bfloat16)
    xw1 = jnp.pad(xw1, ((0, n_pad - n), (0, 0)))

    # Dense normalized adjacency, laid out as [B_tiles, group, TB, N_pad] rows
    # and flattened so each grid step loads one rectangular (group*TB, NK) tile.
    a_norm = build_norm_adj(edge_index, n)
    a_g = a_norm.reshape(bsz, group, n)
    a_g = jnp.pad(a_g, ((0, b_pad - bsz), (0, 0), (0, n_pad - n)))
    a_blk = a_g.reshape(b_pad // tb, tb, group, n_pad).transpose(0, 2, 1, 3)
    a_flat = a_blk.reshape(b_pad // tb * group * tb, n_pad).astype(jnp.bfloat16)

    # Fuse fc2 / fc3 into one [256, 2] weight + (2,) SMEM bias.
    wfc23 = jnp.concatenate([params["w_fc2"], params["w_fc3"]], axis=1)
    b23 = jnp.concatenate([params["b_fc2"].reshape(-1),
                           params["b_fc3"].reshape(-1)])

    fea, mt = fused_gnn(a_flat, xw1, params["b_conv1"], params["w_fc1"],
                        params["b_fc1"], wfc23, b23,
                        group=group, tb=tb, nk=nk)
    # Drop padded rows; split the packed [mu, theta] slab.
    return fea[:bsz], mt[:bsz, 0], mt[:bsz, 1]


# ----------------------------------------------------------------------------
# Deterministic parameter init (shapes from GNN.__init__; weights as [in, out])
# ----------------------------------------------------------------------------
def init_params(key):
    ks = jax.random.split(key, 8)

    def uni(k, shape, fan_in):
        bound = 1.0 / jnp.sqrt(float(fan_in))
        return jax.random.uniform(k, shape, jnp.float32, -bound, bound)

    return {
        "w_conv1": uni(ks[0], (2, 32), 2),       # GCNConv(2, 32)
        "b_conv1": uni(ks[1], (1, 32), 2),
        "w_fc1":   uni(ks[2], (320, 256), 320),  # Linear(320, 256)
        "b_fc1":   uni(ks[3], (1, 256), 320),
        "w_fc2":   uni(ks[4], (256, 1), 256),    # Linear(256, 1)
        "b_fc2":   uni(ks[5], (1, 1), 256),
        "w_fc3":   uni(ks[6], (256, 1), 256),    # Linear(256, 1)
        "b_fc3":   uni(ks[7], (1, 1), 256),
    }


if __name__ == "__main__":
    key = jax.random.PRNGKey(0)
    k_x, k_p = jax.random.split(key)

    # 20 nodes (2 graph-samples of 10 nodes each), 2 features per node.
    num_nodes = 20
    x = jax.random.normal(k_x, (num_nodes, 2), jnp.float32)

    # deterministic ring graph (bidirectional), edge_index: [2, E]
    src = jnp.arange(num_nodes, dtype=jnp.int32)
    dst = (src + 1) % num_nodes
    edge_index = jnp.stack([jnp.concatenate([src, dst]),
                            jnp.concatenate([dst, src])], axis=0)

    params = init_params(k_p)

    fea_mu, mu, theta = jax.jit(gnn_forward)(x, edge_index, params)
    jax.block_until_ready((fea_mu, mu, theta))

    assert fea_mu.shape == (2, 256)
    assert mu.shape == (2,)
    assert theta.shape == (2,)
    assert bool(jnp.all(jnp.isfinite(fea_mu)))
    assert bool(jnp.all((mu >= 0.0) & (mu <= 1.0)))
    assert bool(jnp.all(theta >= 0.0))
    print("KERNEL_OK")
</pallas_src>

<mosaic_0001>
module attributes {stable_mosaic.version = 11 : i64} {
  func.func @fused_gnn_kernel(%arg0: i32, %arg1: i32, %arg2: memref<80x128xbf16, #tpu.memory_space<vmem>>, %arg3: memref<128x32xbf16, #tpu.memory_space<vmem>>, %arg4: memref<1x32xf32, #tpu.memory_space<vmem>>, %arg5: memref<320x256xf32, #tpu.memory_space<vmem>>, %arg6: memref<1x256xf32, #tpu.memory_space<vmem>>, %arg7: memref<256x2xf32, #tpu.memory_space<vmem>>, %arg8: memref<2xf32, #tpu.memory_space<smem>>, %arg9: memref<8x256xf32, #tpu.memory_space<vmem>>, %arg10: memref<8x2xf32, #tpu.memory_space<vmem>>, %arg11: memref<80x32xf32, #tpu.memory_space<vmem>>) attributes {dimension_semantics = [#tpu.dimension_semantics<parallel>, #tpu.dimension_semantics<arbitrary>], iteration_bounds = array<i64: 1, 1>, scalar_prefetch = 0 : i64, scratch_operands = 1 : i64, tpu.core_type = #tpu.core_type<tc>, window_params = [{transform_indices = @transform_0, window_bounds = array<i64: 80, 128>}, {transform_indices = @transform_1, window_bounds = array<i64: 128, 32>}, {pipeline_mode = #tpu.pipeline_mode<synchronous>, transform_indices = @transform_2, window_bounds = array<i64: 1, 32>}, {pipeline_mode = #tpu.pipeline_mode<synchronous>, transform_indices = @transform_3, window_bounds = array<i64: 320, 256>}, {pipeline_mode = #tpu.pipeline_mode<synchronous>, transform_indices = @transform_4, window_bounds = array<i64: 1, 256>}, {pipeline_mode = #tpu.pipeline_mode<synchronous>, transform_indices = @transform_5, window_bounds = array<i64: 256, 2>}, {transform_indices = @transform_6, window_bounds = array<i64: 2>}, {transform_indices = @transform_7, window_bounds = array<i64: 8, 256>}, {transform_indices = @transform_8, window_bounds = array<i64: 8, 2>}]} {
    %c0_i32 = arith.constant 0 : i32
    %0 = arith.cmpi eq, %arg1, %c0_i32 : i32
    %1 = arith.extui %0 : i1 to i32
    %c0_i32_0 = arith.constant 0 : i32
    %2 = arith.cmpi ne, %1, %c0_i32_0 : i32
    scf.if %2 {
      %cst_10 = arith.constant 0.000000e+00 : f32
      %12 = vector.broadcast %cst_10 : f32 to vector<80x32xf32>
      %c0_11 = arith.constant 0 : index
      %c0_12 = arith.constant 0 : index
      %13 = vector.load %arg11[%c0_11, %c0_12] : memref<80x32xf32, #tpu.memory_space<vmem>>, vector<80x32xf32>
      tpu.vector_store %arg11[%c0_11, %c0_12], %12 {strides = array<i32>} : memref<80x32xf32, #tpu.memory_space<vmem>>, vector<80x32xf32>,
    } else {
    }
    %c0 = arith.constant 0 : index
    %c0_1 = arith.constant 0 : index
    %3 = vector.load %arg11[%c0, %c0_1] : memref<80x32xf32, #tpu.memory_space<vmem>>, vector<80x32xf32>
    %c0_2 = arith.constant 0 : index
    %c0_3 = arith.constant 0 : index
    %4 = vector.load %arg2[%c0_2, %c0_3] : memref<80x128xbf16, #tpu.memory_space<vmem>>, vector<80x128xbf16>
    %c0_4 = arith.constant 0 : index
    %c0_5 = arith.constant 0 : index
    %5 = vector.load %arg3[%c0_4, %c0_5] : memref<128x32xbf16, #tpu.memory_space<vmem>>, vector<128x32xbf16>
    %cst = arith.constant dense<0.000000e+00> : vector<80x32xf32>
    %6 = tpu.matmul %4, %5, %cst {dimension_numbers = #tpu.dot_dimension_numbers<[1], [0], [0], [1], [0, 0, 1, 1], [], []>} : vector<80x128xbf16>, vector<128x32xbf16>, vector<80x32xf32> -> vector<80x32xf32>
    %7 = arith.addf %3, %6 : vector<80x32xf32>
    %c0_6 = arith.constant 0 : index
    %c0_7 = arith.constant 0 : index
    %8 = vector.load %arg11[%c0_6, %c0_7] : memref<80x32xf32, #tpu.memory_space<vmem>>, vector<80x32xf32>
    tpu.vector_store %arg11[%c0_6, %c0_7], %7 {strides = array<i32>} : memref<80x32xf32, #tpu.memory_space<vmem>>, vector<80x32xf32>,
    %c0_i32_8 = arith.constant 0 : i32
    %9 = arith.cmpi eq, %arg1, %c0_i32_8 : i32
    %10 = arith.extui %9 : i1 to i32
    %c0_i32_9 = arith.constant 0 : i32
    %11 = arith.cmpi ne, %10, %c0_i32_9 : i32
    scf.if %11 {
      %c0_10 = arith.constant 0 : index
      %c0_11 = arith.constant 0 : index
      %12 = vector.load %arg4[%c0_10, %c0_11] : memref<1x32xf32, #tpu.memory_space<vmem>>, vector<1x32xf32>
      %13 = vector.shape_cast %12 : vector<1x32xf32> to vector<1x32xf32>
      %14 = vector.broadcast %13 : vector<1x32xf32> to vector<8x32xf32>
      %c0_12 = arith.constant 0 : index
      %c0_13 = arith.constant 0 : index
      %15 = vector.load %arg11[%c0_12, %c0_13] : memref<80x32xf32, #tpu.memory_space<vmem>>, vector<8x32xf32>
      %16 = arith.addf %15, %14 : vector<8x32xf32>
      %cst_14 = arith.constant 0.000000e+00 : f32
      %17 = vector.broadcast %cst_14 : f32 to vector<8x32xf32>
      %18 = arith.maximumf %16, %17 : vector<8x32xf32>
      %c8 = arith.constant 8 : index
      %c0_15 = arith.constant 0 : index
      %19 = vector.load %arg11[%c8, %c0_15] : memref<80x32xf32, #tpu.memory_space<vmem>>, vector<8x32xf32>
      %20 = arith.addf %19, %14 : vector<8x32xf32>
      %cst_16 = arith.constant 0.000000e+00 : f32
      %21 = vector.broadcast %cst_16 : f32 to vector<8x32xf32>
      %22 = arith.maximumf %20, %21 : vector<8x32xf32>
      %c16 = arith.constant 16 : index
      %c0_17 = arith.constant 0 : index
      %23 = vector.load %arg11[%c16, %c0_17] : memref<80x32xf32, #tpu.memory_space<vmem>>, vector<8x32xf32>
      %24 = arith.addf %23, %14 : vector<8x32xf32>
      %cst_18 = arith.constant 0.000000e+00 : f32
      %25 = vector.broadcast %cst_18 : f32 to vector<8x32xf32>
      %26 = arith.maximumf %24, %25 : vector<8x32xf32>
      %c24 = arith.constant 24 : index
      %c0_19 = arith.constant 0 : index
      %27 = vector.load %arg11[%c24, %c0_19] : memref<80x32xf32, #tpu.memory_space<vmem>>, vector<8x32xf32>
      %28 = arith.addf %27, %14 : vector<8x32xf32>
      %cst_20 = arith.constant 0.000000e+00 : f32
      %29 = vector.broadcast %cst_20 : f32 to vector<8x32xf32>
      %30 = arith.maximumf %28, %29 : vector<8x32xf32>
      %c32 = arith.constant 32 : index
      %c0_21 = arith.constant 0 : index
      %31 = vector.load %arg11[%c32, %c0_21] : memref<80x32xf32, #tpu.memory_space<vmem>>, vector<8x32xf32>
      %32 = arith.addf %31, %14 : vector<8x32xf32>
      %cst_22 = arith.constant 0.000000e+00 : f32
      %33 = vector.broadcast %cst_22 : f32 to vector<8x32xf32>
      %34 = arith.maximumf %32, %33 : vector<8x32xf32>
      %c40 = arith.constant 40 : index
      %c0_23 = arith.constant 0 : index
      %35 = vector.load %arg11[%c40, %c0_23] : memref<80x32xf32, #tpu.memory_space<vmem>>, vector<8x32xf32>
      %36 = arith.addf %35, %14 : vector<8x32xf32>
      %cst_24 = arith.constant 0.000000e+00 : f32
      %37 = vector.broadcast %cst_24 : f32 to vector<8x32xf32>
      %38 = arith.maximumf %36, %37 : vector<8x32xf32>
      %c48 = arith.constant 48 : index
      %c0_25 = arith.constant 0 : index
      %39 = vector.load %arg11[%c48, %c0_25] : memref<80x32xf32, #tpu.memory_space<vmem>>, vector<8x32xf32>
      %40 = arith.addf %39, %14 : vector<8x32xf32>
      %cst_26 = arith.constant 0.000000e+00 : f32
      %41 = vector.broadcast %cst_26 : f32 to vector<8x32xf32>
      %42 = arith.maximumf %40, %41 : vector<8x32xf32>
      %c56 = arith.constant 56 : index
      %c0_27 = arith.constant 0 : index
      %43 = vector.load %arg11[%c56, %c0_27] : memref<80x32xf32, #tpu.memory_space<vmem>>, vector<8x32xf32>
      %44 = arith.addf %43, %14 : vector<8x32xf32>
      %cst_28 = arith.constant 0.000000e+00 : f32
      %45 = vector.broadcast %cst_28 : f32 to vector<8x32xf32>
      %46 = arith.maximumf %44, %45 : vector<8x32xf32>
      %c64 = arith.constant 64 : index
      %c0_29 = arith.constant 0 : index
      %47 = vector.load %arg11[%c64, %c0_29] : memref<80x32xf32, #tpu.memory_space<vmem>>, vector<8x32xf32>
      %48 = arith.addf %47, %14 : vector<8x32xf32>
      %cst_30 = arith.constant 0.000000e+00 : f32
      %49 = vector.broadcast %cst_30 : f32 to vector<8x32xf32>
      %50 = arith.maximumf %48, %49 : vector<8x32xf32>
      %c72 = arith.constant 72 : index
      %c0_31 = arith.constant 0 : index
      %51 = vector.load %arg11[%c72, %c0_31] : memref<80x32xf32, #tpu.memory_space<vmem>>, vector<8x32xf32>
      %52 = arith.addf %51, %14 : vector<8x32xf32>
      %cst_32 = arith.constant 0.000000e+00 : f32
      %53 = vector.broadcast %cst_32 : f32 to vector<8x32xf32>
      %54 = arith.maximumf %52, %53 : vector<8x32xf32>
      %55 = tpu.concatenate %18, %22, %26, %30, %34, %38, %42, %46, %50, %54 in 1 : vector<8x32xf32>, vector<8x32xf32>, vector<8x32xf32>, vector<8x32xf32>, vector<8x32xf32>, vector<8x32xf32>, vector<8x32xf32>, vector<8x32xf32>, vector<8x32xf32>, vector<8x32xf32> -> vector<8x320xf32>
      %c0_33 = arith.constant 0 : index
      %c0_34 = arith.constant 0 : index
      %56 = vector.load %arg5[%c0_33, %c0_34] : memref<320x256xf32, #tpu.memory_space<vmem>>, vector<320x256xf32>
      %cst_35 = arith.constant dense<0.000000e+00> : vector<8x256xf32>
      %57 = tpu.matmul %55, %56, %cst_35 {dimension_numbers = #tpu.dot_dimension_numbers<[1], [0], [0], [1], [0, 0, 1, 1], [], []>} : vector<8x320xf32>, vector<320x256xf32>, vector<8x256xf32> -> vector<8x256xf32>
      %c0_36 = arith.constant 0 : index
      %c0_37 = arith.constant 0 : index
      %58 = vector.load %arg6[%c0_36, %c0_37] : memref<1x256xf32, #tpu.memory_space<vmem>>, vector<1x256xf32>
      %59 = vector.shape_cast %58 : vector<1x256xf32> to vector<1x256xf32>
      %60 = vector.broadcast %59 : vector<1x256xf32> to vector<8x256xf32>
      %61 = arith.addf %57, %60 : vector<8x256xf32>
      %62 = arith.mulf %61, %61 : vector<8x256xf32>
      %cst_38 = arith.constant dense<0.000000e+00> : vector<8xf32>
      %63 = vector.multi_reduction <add>, %62, %cst_38 [1] : vector<8x256xf32> to vector<8xf32>
      %64 = vector.shape_cast %63 : vector<8xf32> to vector<8x1xf32>
      %cst_39 = arith.constant 1.000000e-24 : f32
      %65 = vector.broadcast %cst_39 : f32 to vector<8x1xf32>
      %66 = arith.maximumf %64, %65 : vector<8x1xf32>
      %67 = math.rsqrt %66 : vector<8x1xf32>
      %68 = vector.broadcast %67 : vector<8x1xf32> to vector<8x256xf32>
      %69 = arith.mulf %61, %68 : vector<8x256xf32>
      %c0_40 = arith.constant 0 : index
      %c0_41 = arith.constant 0 : index
      %70 = vector.load %arg9[%c0_40, %c0_41] : memref<8x256xf32, #tpu.memory_space<vmem>>, vector<8x256xf32>
      tpu.vector_store %arg9[%c0_40, %c0_41], %69 {strides = array<i32>} : memref<8x256xf32, #tpu.memory_space<vmem>>, vector<8x256xf32>,
      %c0_42 = arith.constant 0 : index
      %c0_43 = arith.constant 0 : index
      %71 = vector.load %arg7[%c0_42, %c0_43] : memref<256x2xf32, #tpu.memory_space<vmem>>, vector<256x2xf32>
      %cst_44 = arith.constant dense<0.000000e+00> : vector<8x2xf32>
      %72 = tpu.matmul %69, %71, %cst_44 {dimension_numbers = #tpu.dot_dimension_numbers<[1], [0], [0], [1], [0, 0, 1, 1], [], []>} : vector<8x256xf32>, vector<256x2xf32>, vector<8x2xf32> -> vector<8x2xf32>
      %73 = vector.extract_strided_slice %72 {offsets = [0, 0], sizes = [8, 1], strides = [1, 1]} : vector<8x2xf32> to vector<8x1xf32>
      %c0_45 = arith.constant 0 : index
      %74 = memref.load %arg8[%c0_45] : memref<2xf32, #tpu.memory_space<smem>>
      %75 = vector.broadcast %74 : f32 to vector<8x1xf32>
      %76 = arith.addf %73, %75 : vector<8x1xf32>
      %77 = vector.extract_strided_slice %72 {offsets = [0, 1], sizes = [8, 1], strides = [1, 1]} : vector<8x2xf32> to vector<8x1xf32>
      %c1 = arith.constant 1 : index
      %78 = memref.load %arg8[%c1] : memref<2xf32, #tpu.memory_space<smem>>
      %79 = vector.broadcast %78 : f32 to vector<8x1xf32>
      %80 = arith.addf %77, %79 : vector<8x1xf32>
      %81 = arith.negf %76 : vector<8x1xf32>
      %82 = math.exp %81 : vector<8x1xf32>
      %cst_46 = arith.constant 1.000000e+00 : f32
      %83 = vector.broadcast %cst_46 : f32 to vector<8x1xf32>
      %84 = arith.addf %83, %82 : vector<8x1xf32>
      %85 = arith.divf %83, %84 : vector<8x1xf32>
      %cst_47 = arith.constant 0.000000e+00 : f32
      %86 = vector.broadcast %cst_47 : f32 to vector<8x1xf32>
      %87 = arith.maximumf %80, %86 : vector<8x1xf32>
      %88 = math.absf %80 : vector<8x1xf32>
      %cst_48 = arith.constant 0.000000e+00 : f32
      %89 = vector.broadcast %cst_48 : f32 to vector<8x1xf32>
      %90 = arith.subf %89, %88 : vector<8x1xf32>
      %91 = math.exp %90 : vector<8x1xf32>
      %92 = math.log1p %91 : vector<8x1xf32>
      %93 = arith.addf %87, %92 : vector<8x1xf32>
      %94 = tpu.concatenate %85, %93 in 1 : vector<8x1xf32>, vector<8x1xf32> -> vector<8x2xf32>
      %c0_49 = arith.constant 0 : index
      %c0_50 = arith.constant 0 : index
      %95 = vector.load %arg10[%c0_49, %c0_50] : memref<8x2xf32, #tpu.memory_space<vmem>>, vector<8x2xf32>
      tpu.vector_store %arg10[%c0_49, %c0_50], %94 {strides = array<i32>} : memref<8x2xf32, #tpu.memory_space<vmem>>, vector<8x2xf32>,
    } else {
    }
    return
  }
  func.func @transform_0(%arg0: i32, %arg1: i32) -> (i32, i32) {
    %c0_i32 = arith.constant 0 : i32
    return %arg0, %arg1 : i32, i32
  }
  func.func @transform_1(%arg0: i32, %arg1: i32) -> (i32, i32) {
    %c0_i32 = arith.constant 0 : i32
    %c0_i32_0 = arith.constant 0 : i32
    return %arg1, %c0_i32 : i32, i32
  }
  func.func @transform_2(%arg0: i32, %arg1: i32) -> (i32, i32) {
    %c0_i32 = arith.constant 0 : i32
    %c0_i32_0 = arith.constant 0 : i32
    %c0_i32_1 = arith.constant 0 : i32
    return %c0_i32, %c0_i32_0 : i32, i32
  }
  func.func @transform_3(%arg0: i32, %arg1: i32) -> (i32, i32) {
    %c0_i32 = arith.constant 0 : i32
    %c0_i32_0 = arith.constant 0 : i32
    %c0_i32_1 = arith.constant 0 : i32
    return %c0_i32, %c0_i32_0 : i32, i32
  }
  func.func @transform_4(%arg0: i32, %arg1: i32) -> (i32, i32) {
    %c0_i32 = arith.constant 0 : i32
    %c0_i32_0 = arith.constant 0 : i32
    %c0_i32_1 = arith.constant 0 : i32
    return %c0_i32, %c0_i32_0 : i32, i32
  }
  func.func @transform_5(%arg0: i32, %arg1: i32) -> (i32, i32) {
    %c0_i32 = arith.constant 0 : i32
    %c0_i32_0 = arith.constant 0 : i32
    %c0_i32_1 = arith.constant 0 : i32
    return %c0_i32, %c0_i32_0 : i32, i32
  }
  func.func @transform_6(%arg0: i32, %arg1: i32) -> i32 {
    %c0_i32 = arith.constant 0 : i32
    %c0_i32_0 = arith.constant 0 : i32
    return %c0_i32 : i32
  }
  func.func @transform_7(%arg0: i32, %arg1: i32) -> (i32, i32) {
    %c0_i32 = arith.constant 0 : i32
    %c0_i32_0 = arith.constant 0 : i32
    return %arg0, %c0_i32 : i32, i32
  }
  func.func @transform_8(%arg0: i32, %arg1: i32) -> (i32, i32) {
    %c0_i32 = arith.constant 0 : i32
    %c0_i32_0 = arith.constant 0 : i32
    return %arg0, %c0_i32 : i32, i32
  }
}

</mosaic_0001>

<llo_original>
// kernel: gnn_forward.1
$region0: #{gnn_forward.1}
  #allocation0 [shape = 'u32[]', space=smem, size = 0x4, offset = 0x4, fixed_abs, tag = 'smem constant byte address 0x4 - core index']
  #allocation1 [shape = 'u32[72,128]{1,0:T(1,128)}', space=vmem, size = 0x9000, scoped, tag = 'internal scratch']
  #allocation2 [shape = 'f32[80,32]{1,0:T(8,128)}', space=vmem, size = 0xa000, scoped, tag = 'scratch operand']
  %s0 = inlined_call_operand.vmem [shape: bf16[80,128], index: 0, kind: input, shape index: {}]
  %s1 = inlined_call_operand.vmem [shape: bf16[128,32], index: 1, kind: input, shape index: {}]
  %s2 = inlined_call_operand.vmem [shape: f32[1,32], index: 2, kind: input, shape index: {}]
  %s3 = inlined_call_operand.vmem [shape: f32[320,256], index: 3, kind: input, shape index: {}]
  %s4 = inlined_call_operand.vmem [shape: f32[1,256], index: 4, kind: input, shape index: {}]
  %s5 = inlined_call_operand.vmem [shape: f32[256,2], index: 5, kind: input, shape index: {}]
  %s6 = inlined_call_operand.vmem [shape: f32[2], index: 6, kind: input, shape index: {}]
  %s7 = inlined_call_operand.vmem [shape: f32[8,256], index: 7, kind: output, shape index: {0}]
  %s8 = inlined_call_operand.vmem [shape: f32[8,2], index: 8, kind: output, shape index: {1}]
  %9 = xla_tuple %s7, %s8
  %s10 = sld [smem:[#allocation0]]
  $region58: #{gnn_forward.1} parent=0
    _
  %s12 = ssub.s32 1, %s10
  %s13 = scalar_select 0, %s12, %s10
  $region1: #{gnn_forward.1} parent=0
    #allocation3 [shape = 'u8[512]{0}', space=smem, size = 0x200, scoped, tag = 'input window, operand 6, single buffered']
    #allocation4 [shape = 's32[1]{0}', space=sflag, size = 0x4, scoped, tag = 'scoped memory for gnn_forward.1']
    %14 = vsyncpa [#allocation4], 0
    // Predicated region
    $region2: #{gnn_forward.1} parent=1 // pred_check
      _
    $region3: #{gnn_forward.1} parent=1 // pred_check_branch
      %16 = sbr.rel (0) target = $region5
    $region4: #{gnn_forward.1} parent=1 // pred_region
      _
    $region5: #{gnn_forward.1} parent=1 // pred_fallthru
      _
    // Predicated region
    $region6: #{gnn_forward.1} parent=1 // pred_check
      _
    $region7: #{gnn_forward.1} parent=1 // pred_check_branch
      %18 = sbr.rel (0) target = $region9
    $region8: #{gnn_forward.1} parent=1 // pred_region
      _
    $region9: #{gnn_forward.1} parent=1 // pred_fallthru
      _
    // Predicated region
    $region10: #{gnn_forward.1} parent=1 // pred_check
      _
    $region11: #{gnn_forward.1} parent=1 // pred_check_branch
      %20 = sbr.rel (0) target = $region13
    $region12: #{gnn_forward.1} parent=1 // pred_region
      _
    $region13: #{gnn_forward.1} parent=1 // pred_fallthru
      _
    // Predicated region
    $region14: #{gnn_forward.1} parent=1 // pred_check
      _
    $region15: #{gnn_forward.1} parent=1 // pred_check_branch
      %22 = sbr.rel (0) target = $region17
    $region16: #{gnn_forward.1} parent=1 // pred_region
      _
    $region17: #{gnn_forward.1} parent=1 // pred_fallthru
      _
    // Predicated region
    $region18: #{gnn_forward.1} parent=1 // pred_check
      _
    $region19: #{gnn_forward.1} parent=1 // pred_check_branch
      %24 = sbr.rel (0) target = $region21
    $region20: #{gnn_forward.1} parent=1 // pred_region
      _
    $region21: #{gnn_forward.1} parent=1 // pred_fallthru
      _
    // Predicated region
    $region22: #{gnn_forward.1} parent=1 // pred_check
      _
    $region23: #{gnn_forward.1} parent=1 // pred_check_branch
      %26 = sbr.rel (0) target = $region25
    $region24: #{gnn_forward.1} parent=1 // pred_region
      _
    $region25: #{gnn_forward.1} parent=1 // pred_fallthru
      _
    // Predicated region
    $region26: #{gnn_forward.1} parent=1 // pred_check
      _
    $region27: #{gnn_forward.1} parent=1 // pred_check_branch
      %28 = sbr.rel (0) target = $region29
    $region28: #{gnn_forward.1} parent=1 // pred_region
      %30 = vsyncadd [#allocation4], 0
      %s32 = sshll.u32 %s6, 4
      %s33 = int_to_ptr.vmem [resolvable:$true] %s32
      %35 = dma.vmem_to_smem %s33, 16, [#allocation3], [#allocation4]
    $region29: #{gnn_forward.1} parent=1 // pred_fallthru
      _
    // Predicated region
    $region30: #{gnn_forward.1} parent=1 // pred_check
      _
    $region31: #{gnn_forward.1} parent=1 // pred_check_branch
      %37 = sbr.rel (0) target = $region33
    $region32: #{gnn_forward.1} parent=1 // pred_region
      %39 = dma.done [#allocation4], 16
    $region33: #{gnn_forward.1} parent=1 // pred_fallthru
      _
    %40 = sfence
    %p41 = scmp.eq.s32.totalorder 0, 0
    // Predicated region
    $region34: #{gnn_forward.1} parent=1 // pred_check
      %p42 = pneg %p41
    $region35: #{gnn_forward.1} parent=1 // pred_check_branch
      %44 = sbr.rel (%p42) target = $region37
    $region36: #{gnn_forward.1} parent=1 // pred_region
      %vm45 = vcmask 261120
      %46 = vst.msk [vmem:[#allocation2] sm:$0xff] %vm45, 0.0
      %47 = vst.msk [vmem:[#allocation2 + $0x8] sm:$0xff] %vm45, 0.0
      %48 = vst.msk [vmem:[#allocation2 + $0x10] sm:$0xff] %vm45, 0.0
      %49 = vst.msk [vmem:[#allocation2 + $0x18] sm:$0xff] %vm45, 0.0
      %50 = vst.msk [vmem:[#allocation2 + $0x20] sm:$0xff] %vm45, 0.0
      %51 = vst.msk [vmem:[#allocation2 + $0x28] sm:$0xff] %vm45, 0.0
      %52 = vst.msk [vmem:[#allocation2 + $0x30] sm:$0xff] %vm45, 0.0
      %53 = vst.msk [vmem:[#allocation2 + $0x38] sm:$0xff] %vm45, 0.0
      %54 = vst.msk [vmem:[#allocation2 + $0x40] sm:$0xff] %vm45, 0.0
      %55 = vst.msk [vmem:[#allocation2 + $0x48] sm:$0xff] %vm45, 0.0
    $region37: #{gnn_forward.1} parent=1 // pred_fallthru
      _
    %v56 = vld [vmem:[#allocation2] sm:$0xff]
    %v57 = vld [vmem:[#allocation2 + $0x8] sm:$0xff]
    %v58 = vld [vmem:[#allocation2 + $0x10] sm:$0xff]
    %v59 = vld [vmem:[#allocation2 + $0x18] sm:$0xff]
    %v60 = vld [vmem:[#allocation2 + $0x20] sm:$0xff]
    %v61 = vld [vmem:[#allocation2 + $0x28] sm:$0xff]
    %v62 = vld [vmem:[#allocation2 + $0x30] sm:$0xff]
    %v63 = vld [vmem:[#allocation2 + $0x38] sm:$0xff]
    %v64 = vld [vmem:[#allocation2 + $0x40] sm:$0xff]
    %v65 = vld [vmem:[#allocation2 + $0x48] sm:$0xff]
    %v66 = vld [vmem:[%s0] sm:$0xf]
    %v67 = vld [vmem:[%s0 + $0x4] sm:$0xf]
    %v68 = vld [vmem:[%s0 + $0x8] sm:$0xf]
    %v69 = vld [vmem:[%s0 + $0xc] sm:$0xf]
    %v70 = vld [vmem:[%s0 + $0x10] sm:$0xf]
    %v71 = vld [vmem:[%s0 + $0x14] sm:$0xf]
    %v72 = vld [vmem:[%s0 + $0x18] sm:$0xf]
    %v73 = vld [vmem:[%s0 + $0x1c] sm:$0xf]
    %v74 = vld [vmem:[%s0 + $0x20] sm:$0xf]
    %v75 = vld [vmem:[%s0 + $0x24] sm:$0xf]
    %v76 = vld [vmem:[%s1] sm:$0xf]
    %v77 = vld [vmem:[%s1 + $0x4] sm:$0xf]
    %v78 = vld [vmem:[%s1 + $0x8] sm:$0xf]
    %v79 = vld [vmem:[%s1 + $0xc] sm:$0xf]
    %v80 = vld [vmem:[%s1 + $0x10] sm:$0xf]
    %v81 = vld [vmem:[%s1 + $0x14] sm:$0xf]
    %v82 = vld [vmem:[%s1 + $0x18] sm:$0xf]
    %v83 = vld [vmem:[%s1 + $0x1c] sm:$0xf]
    %v84 = vld [vmem:[%s1 + $0x20] sm:$0xf]
    %v85 = vld [vmem:[%s1 + $0x24] sm:$0xf]
    %v86 = vld [vmem:[%s1 + $0x28] sm:$0xf]
    %v87 = vld [vmem:[%s1 + $0x2c] sm:$0xf]
    %v88 = vld [vmem:[%s1 + $0x30] sm:$0xf]
    %v89 = vld [vmem:[%s1 + $0x34] sm:$0xf]
    %v90 = vld [vmem:[%s1 + $0x38] sm:$0xf]
    %v91 = vld [vmem:[%s1 + $0x3c] sm:$0xf]
    %v102 = vunpack.c.l.b16 %v66
    %v103 = vunpack.c.l.b16 %v67
    %v104 = vunpack.c.l.b16 %v68
    %v105 = vunpack.c.l.b16 %v69
    %v106 = vunpack.c.l.b16 %v70
    %v107 = vunpack.c.l.b16 %v71
    %v108 = vunpack.c.l.b16 %v72
    %v109 = vunpack.c.l.b16 %v73
    %v110 = vunpack.c.l.b16 %v74
    %v111 = vunpack.c.l.b16 %v75
    %v112 = vpack.c.b16 %v103, %v102
    %v113 = vpack.c.b16 %v105, %v104
    %v114 = vpack.c.b16 %v107, %v106
    %v115 = vpack.c.b16 %v109, %v108
    %v116 = vpack.c.b16 %v111, %v110
    %v138 = vunpack.c.l.b16 %v76
    %v139 = vunpack.c.l.b16 %v77
    %v140 = vunpack.c.l.b16 %v78
    %v141 = vunpack.c.l.b16 %v79
    %v142 = vunpack.c.l.b16 %v80
    %v143 = vunpack.c.l.b16 %v81
    %v144 = vunpack.c.l.b16 %v82
    %v145 = vunpack.c.l.b16 %v83
    %v146 = vunpack.c.l.b16 %v84
    %v147 = vunpack.c.l.b16 %v85
    %v148 = vunpack.c.l.b16 %v86
    %v149 = vunpack.c.l.b16 %v87
    %v150 = vunpack.c.l.b16 %v88
    %v151 = vunpack.c.l.b16 %v89
    %v152 = vunpack.c.l.b16 %v90
    %v153 = vunpack.c.l.b16 %v91
    %v154 = vpack.c.b16 %v139, %v138
    %v155 = vpack.c.b16 %v141, %v140
    %v156 = vpack.c.b16 %v143, %v142
    %v157 = vpack.c.b16 %v145, %v144
    %v158 = vpack.c.b16 %v147, %v146
    %v159 = vpack.c.b16 %v149, %v148
    %v160 = vpack.c.b16 %v151, %v150
    %v161 = vpack.c.b16 %v153, %v152
    %170 = vmatpush.bf16.msra.mxu0 %v161
    %171 = vmatpush.bf16.msra.mxu0 %v160
    %172 = vmatpush.bf16.msra.mxu0 %v159
    %173 = vmatpush.bf16.msra.mxu0 %v158
    %174 = vmatpush.bf16.msra.mxu0 %v157
    %175 = vmatpush.bf16.msra.mxu0 %v156
    %176 = vmatpush.bf16.msra.mxu0 %v155
    %177 = vmatpush.bf16.msra.mxu0 %v154
    %178 = vmatmul.bf16.gmra.mxu0 %v112
    %v179 = vpop.f32.mrf.mxu0
    %v180 = vadd.f32 0.0, %v179
    %v181 = vpop.f32.mrf.mxu0
    %v182 = vadd.f32 0.0, %v181
    %183 = vmatmul.bf16.gmra.mxu0 %v113
    %v184 = vpop.f32.mrf.mxu0
    %v185 = vadd.f32 0.0, %v184
    %v186 = vpop.f32.mrf.mxu0
    %v187 = vadd.f32 0.0, %v186
    %188 = vmatmul.bf16.gmra.mxu0 %v114
    %v189 = vpop.f32.mrf.mxu0
    %v190 = vadd.f32 0.0, %v189
    %v191 = vpop.f32.mrf.mxu0
    %v192 = vadd.f32 0.0, %v191
    %193 = vmatmul.bf16.gmra.mxu0 %v115
    %v194 = vpop.f32.mrf.mxu0
    %v195 = vadd.f32 0.0, %v194
    %v196 = vpop.f32.mrf.mxu0
    %v197 = vadd.f32 0.0, %v196
    %198 = vmatmul.bf16.gmra.mxu0 %v116
    %v199 = vpop.f32.mrf.mxu0
    %v200 = vadd.f32 0.0, %v199
    %v201 = vpop.f32.mrf.mxu0
    %v202 = vadd.f32 0.0, %v201
    %203 = vdwg.mxu0
    %v204 = vadd.f32 %v56, %v180
    %v205 = vadd.f32 %v57, %v182
    %v206 = vadd.f32 %v58, %v185
    %v207 = vadd.f32 %v59, %v187
    %v208 = vadd.f32 %v60, %v190
    %v209 = vadd.f32 %v61, %v192
    %v210 = vadd.f32 %v62, %v195
    %v211 = vadd.f32 %v63, %v197
    %v212 = vadd.f32 %v64, %v200
    %v213 = vadd.f32 %v65, %v202
    %vm214 = vcmask 261120
    %215 = vst.msk [vmem:[#allocation2] sm:$0xff] %vm214, %v204
    %216 = vst.msk [vmem:[#allocation2 + $0x8] sm:$0xff] %vm214, %v205
    %217 = vst.msk [vmem:[#allocation2 + $0x10] sm:$0xff] %vm214, %v206
    %218 = vst.msk [vmem:[#allocation2 + $0x18] sm:$0xff] %vm214, %v207
    %219 = vst.msk [vmem:[#allocation2 + $0x20] sm:$0xff] %vm214, %v208
    %220 = vst.msk [vmem:[#allocation2 + $0x28] sm:$0xff] %vm214, %v209
    %221 = vst.msk [vmem:[#allocation2 + $0x30] sm:$0xff] %vm214, %v210
    %222 = vst.msk [vmem:[#allocation2 + $0x38] sm:$0xff] %vm214, %v211
    %223 = vst.msk [vmem:[#allocation2 + $0x40] sm:$0xff] %vm214, %v212
    %224 = vst.msk [vmem:[#allocation2 + $0x48] sm:$0xff] %vm214, %v213
    // Predicated region
    $region38: #{gnn_forward.1} parent=1 // pred_check
      %p225 = pneg %p41
    $region39: #{gnn_forward.1} parent=1 // pred_check_branch
      %227 = sbr.rel (%p225) target = $region41
    $region40: #{gnn_forward.1} parent=1 // pred_region
      %v228 = vld [vmem:[%s2] sm:$0x1]
      %v230 = vperm.slane %v228, 0
      %v232 = vld [vmem:[#allocation2] sm:$0xff]
      %v233 = vadd.f32 %v232, %v230
      %v234 = vmax.f32 %v233, 0.0
      %v235 = vld [vmem:[#allocation2 + $0x8] sm:$0xff]
      %v236 = vadd.f32 %v235, %v230
      %v237 = vmax.f32 %v236, 0.0
      %v238 = vld [vmem:[#allocation2 + $0x10] sm:$0xff]
      %v239 = vadd.f32 %v238, %v230
      %v240 = vmax.f32 %v239, 0.0
      %v241 = vld [vmem:[#allocation2 + $0x18] sm:$0xff]
      %v242 = vadd.f32 %v241, %v230
      %v243 = vmax.f32 %v242, 0.0
      %v244 = vld [vmem:[#allocation2 + $0x20] sm:$0xff]
      %v245 = vadd.f32 %v244, %v230
      %v246 = vmax.f32 %v245, 0.0
      %v247 = vld [vmem:[#allocation2 + $0x28] sm:$0xff]
      %v248 = vadd.f32 %v247, %v230
      %v249 = vmax.f32 %v248, 0.0
      %v250 = vld [vmem:[#allocation2 + $0x30] sm:$0xff]
      %v251 = vadd.f32 %v250, %v230
      %v252 = vmax.f32 %v251, 0.0
      %v253 = vld [vmem:[#allocation2 + $0x38] sm:$0xff]
      %v254 = vadd.f32 %v253, %v230
      %v255 = vmax.f32 %v254, 0.0
      %v256 = vld [vmem:[#allocation2 + $0x40] sm:$0xff]
      %v257 = vadd.f32 %v256, %v230
      %v258 = vmax.f32 %v257, 0.0
      %v259 = vld [vmem:[#allocation2 + $0x48] sm:$0xff]
      %v260 = vadd.f32 %v259, %v230
      %v261 = vmax.f32 %v260, 0.0
      %263 = vrot.lane.b32.xlu0 %v237, 32
      %v264 = vpop.permute.xlu0 %263
      %267 = vrot.lane.b32.xlu0 %v240, 64
      %v268 = vpop.permute.xlu0 %267
      %271 = vrot.lane.b32.xlu0 %v243, 96
      %v272 = vpop.permute.xlu0 %271
      %275 = vrot.lane.b32.xlu0 %v249, 32
      %v276 = vpop.permute.xlu0 %275
      %279 = vrot.lane.b32.xlu0 %v252, 64
      %v280 = vpop.permute.xlu0 %279
      %283 = vrot.lane.b32.xlu0 %v255, 96
      %v284 = vpop.permute.xlu0 %283
      %287 = vrot.lane.b32.xlu0 %v261, 32
      %v288 = vpop.permute.xlu0 %287
      %v290 = vsel %vm214, %v234, %v264
      %vm291 = vcmask 523264
      %v292 = vsel %vm291, %v290, %v268
      %vm293 = vcmask 785408
      %v294 = vsel %vm293, %v292, %v272
      %v295 = vsel %vm214, %v246, %v276
      %v296 = vsel %vm291, %v295, %v280
      %v297 = vsel %vm293, %v296, %v284
      %v298 = vsel %vm214, %v258, %v288
      %v299 = vld [vmem:[%s3] sm:$0xff]
      %v300 = vld [vmem:[%s3 + $0x8] sm:$0xff]
      %v301 = vld [vmem:[%s3 + $0x10] sm:$0xff]
      %v302 = vld [vmem:[%s3 + $0x18] sm:$0xff]
      %v303 = vld [vmem:[%s3 + $0x20] sm:$0xff]
      %v304 = vld [vmem:[%s3 + $0x28] sm:$0xff]
      %v305 = vld [vmem:[%s3 + $0x30] sm:$0xff]
      %v306 = vld [vmem:[%s3 + $0x38] sm:$0xff]
      %v307 = vld [vmem:[%s3 + $0x40] sm:$0xff]
      %v308 = vld [vmem:[%s3 + $0x48] sm:$0xff]
      %v309 = vld [vmem:[%s3 + $0x50] sm:$0xff]
      %v310 = vld [vmem:[%s3 + $0x58] sm:$0xff]
      %v311 = vld [vmem:[%s3 + $0x60] sm:$0xff]
      %v312 = vld [vmem:[%s3 + $0x68] sm:$0xff]
      %v313 = vld [vmem:[%s3 + $0x70] sm:$0xff]
      %v314 = vld [vmem:[%s3 + $0x78] sm:$0xff]
      %v315 = vld [vmem:[%s3 + $0x80] sm:$0xff]
      %v316 = vld [vmem:[%s3 + $0x88] sm:$0xff]
      %v317 = vld [vmem:[%s3 + $0x90] sm:$0xff]
      %v318 = vld [vmem:[%s3 + $0x98] sm:$0xff]
      %v319 = vld [vmem:[%s3 + $0xa0] sm:$0xff]
      %v320 = vld [vmem:[%s3 + $0xa8] sm:$0xff]
      %v321 = vld [vmem:[%s3 + $0xb0] sm:$0xff]
      %v322 = vld [vmem:[%s3 + $0xb8] sm:$0xff]
      %v323 = vld [vmem:[%s3 + $0xc0] sm:$0xff]
      %v324 = vld [vmem:[%s3 + $0xc8] sm:$0xff]
      %v325 = vld [vmem:[%s3 + $0xd0] sm:$0xff]
      %v326 = vld [vmem:[%s3 + $0xd8] sm:$0xff]
      %v327 = vld [vmem:[%s3 + $0xe0] sm:$0xff]
      %v328 = vld [vmem:[%s3 + $0xe8] sm:$0xff]
      %v329 = vld [vmem:[%s3 + $0xf0] sm:$0xff]
      %v330 = vld [vmem:[%s3 + $0xf8] sm:$0xff]
      %v331 = vld [vmem:[%s3 + $0x100] sm:$0xff]
      %v332 = vld [vmem:[%s3 + $0x108] sm:$0xff]
      %v333 = vld [vmem:[%s3 + $0x110] sm:$0xff]
      %v334 = vld [vmem:[%s3 + $0x118] sm:$0xff]
      %v335 = vld [vmem:[%s3 + $0x120] sm:$0xff]
      %v336 = vld [vmem:[%s3 + $0x128] sm:$0xff]
      %v337 = vld [vmem:[%s3 + $0x130] sm:$0xff]
      %v338 = vld [vmem:[%s3 + $0x138] sm:$0xff]
      %v339 = vld [vmem:[%s3 + $0x140] sm:$0xff]
      %v340 = vld [vmem:[%s3 + $0x148] sm:$0xff]
      %v341 = vld [vmem:[%s3 + $0x150] sm:$0xff]
      %v342 = vld [vmem:[%s3 + $0x158] sm:$0xff]
      %v343 = vld [vmem:[%s3 + $0x160] sm:$0xff]
      %v344 = vld [vmem:[%s3 + $0x168] sm:$0xff]
      %v345 = vld [vmem:[%s3 + $0x170] sm:$0xff]
      %v346 = vld [vmem:[%s3 + $0x178] sm:$0xff]
      %v347 = vld [vmem:[%s3 + $0x180] sm:$0xff]
      %v348 = vld [vmem:[%s3 + $0x188] sm:$0xff]
      %v349 = vld [vmem:[%s3 + $0x190] sm:$0xff]
      %v350 = vld [vmem:[%s3 + $0x198] sm:$0xff]
      %v351 = vld [vmem:[%s3 + $0x1a0] sm:$0xff]
      %v352 = vld [vmem:[%s3 + $0x1a8] sm:$0xff]
      %v353 = vld [vmem:[%s3 + $0x1b0] sm:$0xff]
      %v354 = vld [vmem:[%s3 + $0x1b8] sm:$0xff]
      %v355 = vld [vmem:[%s3 + $0x1c0] sm:$0xff]
      %v356 = vld [vmem:[%s3 + $0x1c8] sm:$0xff]
      %v357 = vld [vmem:[%s3 + $0x1d0] sm:$0xff]
      %v358 = vld [vmem:[%s3 + $0x1d8] sm:$0xff]
      %v359 = vld [vmem:[%s3 + $0x1e0] sm:$0xff]
      %v360 = vld [vmem:[%s3 + $0x1e8] sm:$0xff]
      %v361 = vld [vmem:[%s3 + $0x1f0] sm:$0xff]
      %v362 = vld [vmem:[%s3 + $0x1f8] sm:$0xff]
      %v363 = vld [vmem:[%s3 + $0x200] sm:$0xff]
      %v364 = vld [vmem:[%s3 + $0x208] sm:$0xff]
      %v365 = vld [vmem:[%s3 + $0x210] sm:$0xff]
      %v366 = vld [vmem:[%s3 + $0x218] sm:$0xff]
      %v367 = vld [vmem:[%s3 + $0x220] sm:$0xff]
      %v368 = vld [vmem:[%s3 + $0x228] sm:$0xff]
      %v369 = vld [vmem:[%s3 + $0x230] sm:$0xff]
      %v370 = vld [vmem:[%s3 + $0x238] sm:$0xff]
      %v371 = vld [vmem:[%s3 + $0x240] sm:$0xff]
      %v372 = vld [vmem:[%s3 + $0x248] sm:$0xff]
      %v373 = vld [vmem:[%s3 + $0x250] sm:$0xff]
      %v374 = vld [vmem:[%s3 + $0x258] sm:$0xff]
      %v375 = vld [vmem:[%s3 + $0x260] sm:$0xff]
      %v376 = vld [vmem:[%s3 + $0x268] sm:$0xff]
      %v377 = vld [vmem:[%s3 + $0x270] sm:$0xff]
      %v378 = vld [vmem:[%s3 + $0x278] sm:$0xff]
      %v379 = vld [vmem:[%s4] sm:$0x3]
      %v381 = vperm.slane %v379, 0
      %v382 = vperm.slane %v379, 1
      %v386 = vsel %vm291, %v298, 0
      %388 = vmatpush.msra.mxu0 %v329
      %389 = vmatpush.msra.mxu0 %v327
      %390 = vmatpush.msra.mxu0 %v325
      %391 = vmatpush.msra.mxu0 %v323
      %392 = vmatpush.msra.mxu0 %v321
      %393 = vmatpush.msra.mxu0 %v319
      %394 = vmatpush.msra.mxu0 %v317
      %395 = vmatpush.msra.mxu0 %v315
      %396 = vmatpush.msra.mxu0 %v313
      %397 = vmatpush.msra.mxu0 %v311
      %398 = vmatpush.msra.mxu0 %v309
      %399 = vmatpush.msra.mxu0 %v307
      %400 = vmatpush.msra.mxu0 %v305
      %401 = vmatpush.msra.mxu0 %v303
      %402 = vmatpush.msra.mxu0 %v301
      %403 = vmatpush.msra.mxu0 %v299
      %404 = vmatmul.f32.gmra.mxu0 %v294
      %v405 = vpop.f32.mrf.mxu0
      %v406 = vadd.f32 %v381, %v405
      %407 = vdwg.mxu0
      %408 = vmatpush.msra.mxu0 %v361
      %409 = vmatpush.msra.mxu0 %v359
      %410 = vmatpush.msra.mxu0 %v357
      %411 = vmatpush.msra.mxu0 %v355
      %412 = vmatpush.msra.mxu0 %v353
      %413 = vmatpush.msra.mxu0 %v351
      %414 = vmatpush.msra.mxu0 %v349
      %415 = vmatpush.msra.mxu0 %v347
      %416 = vmatpush.msra.mxu0 %v345
      %417 = vmatpush.msra.mxu0 %v343
      %418 = vmatpush.msra.mxu0 %v341
      %419 = vmatpush.msra.mxu0 %v339
      %420 = vmatpush.msra.mxu0 %v337
      %421 = vmatpush.msra.mxu0 %v335
      %422 = vmatpush.msra.mxu0 %v333
      %423 = vmatpush.msra.mxu0 %v331
      %424 = vmatmul.f32.gmra.mxu0 %v297
      %v425 = vpop.f32.mrf.mxu0
      %v426 = vadd.f32 %v406, %v425
      %427 = vdwg.mxu0
      %428 = vmatpush.msra.mxu0 0.0
      %429 = vmatpush.msra.mxu0 0.0
      %430 = vmatpush.msra.mxu0 0.0
      %431 = vmatpush.msra.mxu0 0.0
      %432 = vmatpush.msra.mxu0 0.0
      %433 = vmatpush.msra.mxu0 0.0
      %434 = vmatpush.msra.mxu0 0.0
      %435 = vmatpush.msra.mxu0 0.0
      %436 = vmatpush.msra.mxu0 %v377
      %437 = vmatpush.msra.mxu0 %v375
      %438 = vmatpush.msra.mxu0 %v373
      %439 = vmatpush.msra.mxu0 %v371
      %440 = vmatpush.msra.mxu0 %v369
      %441 = vmatpush.msra.mxu0 %v367
      %442 = vmatpush.msra.mxu0 %v365
      %443 = vmatpush.msra.mxu0 %v363
      %444 = vmatmul.f32.gmra.mxu0 %v386
      %v445 = vpop.f32.mrf.mxu0
      %v446 = vadd.f32 %v426, %v445
      %447 = vdwg.mxu0
      %448 = vmatpush.msra.mxu0 %v330
      %449 = vmatpush.msra.mxu0 %v328
      %450 = vmatpush.msra.mxu0 %v326
      %451 = vmatpush.msra.mxu0 %v324
      %452 = vmatpush.msra.mxu0 %v322
      %453 = vmatpush.msra.mxu0 %v320
      %454 = vmatpush.msra.mxu0 %v318
      %455 = vmatpush.msra.mxu0 %v316
      %456 = vmatpush.msra.mxu0 %v314
      %457 = vmatpush.msra.mxu0 %v312
      %458 = vmatpush.msra.mxu0 %v310
      %459 = vmatpush.msra.mxu0 %v308
      %460 = vmatpush.msra.mxu0 %v306
      %461 = vmatpush.msra.mxu0 %v304
      %462 = vmatpush.msra.mxu0 %v302
      %463 = vmatpush.msra.mxu0 %v300
      %464 = vmatmul.f32.gmra.mxu0 %v294
      %v465 = vpop.f32.mrf.mxu0
      %v466 = vadd.f32 %v382, %v465
      %467 = vdwg.mxu0
      %468 = vmatpush.msra.mxu0 %v362
      %469 = vmatpush.msra.mxu0 %v360
      %470 = vmatpush.msra.mxu0 %v358
      %471 = vmatpush.msra.mxu0 %v356
      %472 = vmatpush.msra.mxu0 %v354
      %473 = vmatpush.msra.mxu0 %v352
      %474 = vmatpush.msra.mxu0 %v350
      %475 = vmatpush.msra.mxu0 %v348
      %476 = vmatpush.msra.mxu0 %v346
      %477 = vmatpush.msra.mxu0 %v344
      %478 = vmatpush.msra.mxu0 %v342
      %479 = vmatpush.msra.mxu0 %v340
      %480 = vmatpush.msra.mxu0 %v338
      %481 = vmatpush.msra.mxu0 %v336
      %482 = vmatpush.msra.mxu0 %v334
      %483 = vmatpush.msra.mxu0 %v332
      %484 = vmatmul.f32.gmra.mxu0 %v297
      %v485 = vpop.f32.mrf.mxu0
      %v486 = vadd.f32 %v466, %v485
      %487 = vdwg.mxu0
      %488 = vmatpush.msra.mxu0 0.0
      %489 = vmatpush.msra.mxu0 0.0
      %490 = vmatpush.msra.mxu0 0.0
      %491 = vmatpush.msra.mxu0 0.0
      %492 = vmatpush.msra.mxu0 0.0
      %493 = vmatpush.msra.mxu0 0.0
      %494 = vmatpush.msra.mxu0 0.0
      %495 = vmatpush.msra.mxu0 0.0
      %496 = vmatpush.msra.mxu0 %v378
      %497 = vmatpush.msra.mxu0 %v376
      %498 = vmatpush.msra.mxu0 %v374
      %499 = vmatpush.msra.mxu0 %v372
      %500 = vmatpush.msra.mxu0 %v370
      %501 = vmatpush.msra.mxu0 %v368
      %502 = vmatpush.msra.mxu0 %v366
      %503 = vmatpush.msra.mxu0 %v364
      %504 = vmatmul.f32.gmra.mxu0 %v386
      %v505 = vpop.f32.mrf.mxu0
      %v506 = vadd.f32 %v486, %v505
      %507 = vdwg.mxu0
      %v508 = vmul.f32 %v446, %v446
      %v509 = vmul.f32 %v506, %v506
      %v510 = vadd.f32 %v508, %v509
      %511 = vadd.xlane.f32.xlu0 %v510
      %v512 = vpop.xlane.xlu0 %511
      %v513 = vmax.f32 %v512, 1e-24
      %v514 = vrsqrt.pop %v513
      %v515 = vmul.f32 %v514, %v513
      %v516 = vmul.f32 %v515, %v514
      %v517 = vmul.f32 0.5, %v516
      %v518 = vsub.f32 1.5, %v517
      %v519 = vmul.f32 %v514, %v518
      %vm520 = vweird.f32 %v513
      %vm521 = vweird.f32 %v514
      %vm522 = vmor %vm520, %vm521
      %v523 = vsel %vm522, %v514, %v519
      %v524 = vmul.f32 %v446, %v523
      %v525 = vmul.f32 %v506, %v523
      %526 = vst [vmem:[%s7] sm:$0xff] %v524
      %527 = vst [vmem:[%s7 + $0x8] sm:$0xff] %v525
      %v528 = vld [vmem:[%s5] sm:$0xff]
      %v529 = vld [vmem:[%s5 + $0x8] sm:$0xff]
      %v530 = vld [vmem:[%s5 + $0x10] sm:$0xff]
      %v531 = vld [vmem:[%s5 + $0x18] sm:$0xff]
      %v532 = vld [vmem:[%s5 + $0x20] sm:$0xff]
      %v533 = vld [vmem:[%s5 + $0x28] sm:$0xff]
      %v534 = vld [vmem:[%s5 + $0x30] sm:$0xff]
      %v535 = vld [vmem:[%s5 + $0x38] sm:$0xff]
      %v536 = vld [vmem:[%s5 + $0x40] sm:$0xff]
      %v537 = vld [vmem:[%s5 + $0x48] sm:$0xff]
      %v538 = vld [vmem:[%s5 + $0x50] sm:$0xff]
      %v539 = vld [vmem:[%s5 + $0x58] sm:$0xff]
      %v540 = vld [vmem:[%s5 + $0x60] sm:$0xff]
      %v541 = vld [vmem:[%s5 + $0x68] sm:$0xff]
      %v542 = vld [vmem:[%s5 + $0x70] sm:$0xff]
      %v543 = vld [vmem:[%s5 + $0x78] sm:$0xff]
      %v544 = vld [vmem:[%s5 + $0x80] sm:$0xff]
      %v545 = vld [vmem:[%s5 + $0x88] sm:$0xff]
      %v546 = vld [vmem:[%s5 + $0x90] sm:$0xff]
      %v547 = vld [vmem:[%s5 + $0x98] sm:$0xff]
      %v548 = vld [vmem:[%s5 + $0xa0] sm:$0xff]
      %v549 = vld [vmem:[%s5 + $0xa8] sm:$0xff]
      %v550 = vld [vmem:[%s5 + $0xb0] sm:$0xff]
      %v551 = vld [vmem:[%s5 + $0xb8] sm:$0xff]
      %v552 = vld [vmem:[%s5 + $0xc0] sm:$0xff]
      %v553 = vld [vmem:[%s5 + $0xc8] sm:$0xff]
      %v554 = vld [vmem:[%s5 + $0xd0] sm:$0xff]
      %v555 = vld [vmem:[%s5 + $0xd8] sm:$0xff]
      %v556 = vld [vmem:[%s5 + $0xe0] sm:$0xff]
      %v557 = vld [vmem:[%s5 + $0xe8] sm:$0xff]
      %v558 = vld [vmem:[%s5 + $0xf0] sm:$0xff]
      %v559 = vld [vmem:[%s5 + $0xf8] sm:$0xff]
      %560 = vmatpush.msra.mxu0 %v543
      %561 = vmatpush.msra.mxu0 %v542
      %562 = vmatpush.msra.mxu0 %v541
      %563 = vmatpush.msra.mxu0 %v540
      %564 = vmatpush.msra.mxu0 %v539
      %565 = vmatpush.msra.mxu0 %v538
      %566 = vmatpush.msra.mxu0 %v537
      %567 = vmatpush.msra.mxu0 %v536
      %568 = vmatpush.msra.mxu0 %v535
      %569 = vmatpush.msra.mxu0 %v534
      %570 = vmatpush.msra.mxu0 %v533
      %571 = vmatpush.msra.mxu0 %v532
      %572 = vmatpush.msra.mxu0 %v531
      %573 = vmatpush.msra.mxu0 %v530
      %574 = vmatpush.msra.mxu0 %v529
      %575 = vmatpush.msra.mxu0 %v528
      %576 = vmatmul.f32.gmra.mxu0 %v524
      %v577 = vpop.f32.mrf.mxu0
      %v578 = vadd.f32 0.0, %v577
      %579 = vdwg.mxu0
      %580 = vmatpush.msra.mxu0 %v559
      %581 = vmatpush.msra.mxu0 %v558
      %582 = vmatpush.msra.mxu0 %v557
      %583 = vmatpush.msra.mxu0 %v556
      %584 = vmatpush.msra.mxu0 %v555
      %585 = vmatpush.msra.mxu0 %v554
      %586 = vmatpush.msra.mxu0 %v553
      %587 = vmatpush.msra.mxu0 %v552
      %588 = vmatpush.msra.mxu0 %v551
      %589 = vmatpush.msra.mxu0 %v550
      %590 = vmatpush.msra.mxu0 %v549
      %591 = vmatpush.msra.mxu0 %v548
      %592 = vmatpush.msra.mxu0 %v547
      %593 = vmatpush.msra.mxu0 %v546
      %594 = vmatpush.msra.mxu0 %v545
      %595 = vmatpush.msra.mxu0 %v544
      %596 = vmatmul.f32.gmra.mxu0 %v525
      %v597 = vpop.f32.mrf.mxu0
      %v598 = vadd.f32 %v578, %v597
      %599 = vdwg.mxu0
      %s600 = sld [smem:[#allocation3]]
      %v601 = vstv %s600
      %v602 = vadd.f32 %v598, %v601
      %s603 = sld [smem:[#allocation3 + $0x1]]
      %v604 = vstv %s603
      %v605 = vadd.f32 %v598, %v604
      %v606 = vxor.u32 %v602, 2147483648
      %v607 = vmul.f32 %v606, 1.442695
      %v608 = vpow.pop %v607
      %v609 = vadd.f32 %v608, 1.0
      %v610 = vrcp.pop %v609
      %v611 = vmul.f32 %v609, %v610
      %v612 = vsub.f32 1.0, %v611
      %v613 = vmul.f32 %v610, %v612
      %v614 = vadd.f32 %v610, %v613
      %vm615 = vweird.f32 %v609
      %vm616 = vweird.f32 %v610
      %vm617 = vmor %vm615, %vm616
      %v618 = vsel %vm617, %v610, %v614
      %v619 = vand.u32 2147483647, %v609
      %vm620 = vcmp.eq.f32.partialorder %v619, 8.507059e+37
      %v621 = vand.u32 %v609, 2147483648
      %v622 = vor.u32 1.1754944e-38, %v621
      %v623 = vsel %vm620, %v622, %v618
      %v624 = vmul.f32 1.0, %v623
      %v625 = vmax.f32 %v605, 0.0
      %v626 = vand.u32 2147483647, %v605
      %v627 = vsub.f32 0.0, %v626
      %v628 = vmul.f32 %v627, 1.442695
      %v629 = vpow.pop %v628
      %v630 = vadd.f32 %v629, 1.0
      %v631 = vlog2.pop %v630
      %v632 = vmul.f32 %v631, 0.6931472
      %v633 = vmul.f32 -0.5, %v629
      %v634 = vadd.f32 %v633, 1.0
      %v635 = vmul.f32 %v634, %v629
      %v636 = vand.u32 2147483647, %v629
      %vm637 = vcmp.lt.f32.partialorder %v636, 0.0004427343
      %v638 = vsel %vm637, %v635, %v632
      %v639 = vadd.f32 %v625, %v638
      %vm640 = vcmask 7168
      %v641 = vsel %vm640, %v624, %v639
      %vm642 = vcmask 15360
      %643 = vst.msk [vmem:[%s8] sm:$0xff] %vm642, %v641
    $region41: #{gnn_forward.1} parent=1 // pred_fallthru
      _
    // Predicated region
    $region42: #{gnn_forward.1} parent=1 // pred_check
      _
    $region43: #{gnn_forward.1} parent=1 // pred_check_branch
      %645 = sbr.rel (0) target = $region45
    $region44: #{gnn_forward.1} parent=1 // pred_region
      _
    $region45: #{gnn_forward.1} parent=1 // pred_fallthru
      _
    // Predicated region
    $region46: #{gnn_forward.1} parent=1 // pred_check
      _
    $region47: #{gnn_forward.1} parent=1 // pred_check_branch
      %647 = sbr.rel (0) target = $region49
    $region48: #{gnn_forward.1} parent=1 // pred_region
      _
    $region49: #{gnn_forward.1} parent=1 // pred_fallthru
      _
    // Predicated region
    $region50: #{gnn_forward.1} parent=1 // pred_check
      _
    $region51: #{gnn_forward.1} parent=1 // pred_check_branch
      %649 = sbr.rel (0) target = $region53
    $region52: #{gnn_forward.1} parent=1 // pred_region
      _
    $region53: #{gnn_forward.1} parent=1 // pred_fallthru
      _
    // Predicated region
    $region54: #{gnn_forward.1} parent=1 // pred_check
      _
    $region55: #{gnn_forward.1} parent=1 // pred_check_branch
      %651 = sbr.rel (0) target = $region57
    $region56: #{gnn_forward.1} parent=1 // pred_region
      _
    $region57: #{gnn_forward.1} parent=1 // pred_fallthru
      _
    %652 = vsyncpa [#allocation4], 1

</llo_original>
